<compile_context>
chip_gen: v6e
topology: v6e:2x2x1
jax: 0.10.0
libtpu: 0.0.40
codegen_flags: <defaults>
</compile_context>

<pallas_src>
import jax
import jax.numpy as jnp
from jax.experimental import pallas as pl
from jax.experimental.pallas import tpu as pltpu

K = 7     # Conv1d kernel size
PAD = 3   # "same" padding


def spatial_attn_kernel(x_ref, wb_ref, o_ref):
    # x_ref: (TB, L, C) VMEM tile, wb_ref: (2K+1,) SMEM, o_ref: (1, L, TB) VMEM.
    n_b, L, _ = x_ref.shape

    # --- channel reductions, staged batch-on-lanes as (L, TB) ----------------
    lane_idx = jax.lax.broadcasted_iota(jnp.int32, (L, n_b), 1)
    avg_cm = jnp.zeros((L, n_b), jnp.float32)
    mx_cm = jnp.zeros((L, n_b), jnp.float32)
    for i in range(n_b):                                   # static, small TB
        x_i = x_ref[i].astype(jnp.float32)                 # (L, C)
        a_col = jnp.mean(x_i, axis=1, keepdims=True)       # (L, 1)
        m_col = jnp.max(x_i, axis=1, keepdims=True)        # (L, 1)
        sel = lane_idx == i
        avg_cm = jnp.where(sel, jnp.broadcast_to(a_col, (L, n_b)), avg_cm)
        mx_cm = jnp.where(sel, jnp.broadcast_to(m_col, (L, n_b)), mx_cm)

    # --- zero "same" padding along L (the sublane axis of (L, TB)) -----------
    zpad = jnp.zeros((PAD, n_b), jnp.float32)
    avg_p = jnp.concatenate([zpad, avg_cm, zpad], axis=0)  # (L + 2*PAD, TB)
    mx_p = jnp.concatenate([zpad, mx_cm, zpad], axis=0)

    # --- Conv1d(2 -> 1, k=7): 14 statically unrolled taps, scalars from SMEM -
    w = [wb_ref[j] for j in range(2 * K + 1)]              # hoisted scalar reads
    acc = jnp.full((L, n_b), w[2 * K], dtype=jnp.float32)  # bias
    for j in range(K):
        acc = acc + w[j] * avg_p[j:j + L, :] + w[K + j] * mx_p[j:j + L, :]

    o_ref[0] = jax.nn.sigmoid(acc).astype(o_ref.dtype)     # (L, TB)


def spatial_attention(x, w, b, *, tb=None, target_tile_bytes=4 * 1024 * 1024,
                      max_tb=64):
    """x: (B, L, C) f32, w: (2, K) f32, b: (1,) f32 -> (B, L, 1) f32."""
    B, L, C = x.shape
    if tb is None:
        per_elem = L * C * x.dtype.itemsize
        tb = max(1, min(B, max_tb, int(target_tile_bytes // per_elem)))
    tb = int(max(1, min(int(tb), B)))
    g = pl.cdiv(B, tb)

    # Pack Conv1d(2, 1, 7) weights + bias into one 1-D SMEM vector (15,).
    wb = jnp.concatenate([w[0].astype(jnp.float32),
                          w[1].astype(jnp.float32),
                          b.astype(jnp.float32)])

    out_blk = pl.pallas_call(
        spatial_attn_kernel,
        out_shape=jax.ShapeDtypeStruct((g, L, tb), x.dtype),
        grid=(g,),
        in_specs=[
            pl.BlockSpec((tb, L, C), lambda i: (i, 0, 0)),
            pl.BlockSpec(memory_space=pltpu.MemorySpace.SMEM),
        ],
        out_specs=pl.BlockSpec((1, L, tb), lambda i: (i, 0, 0)),
        compiler_params=pltpu.CompilerParams(
            dimension_semantics=("parallel",)),
    )(x, wb)

    # (G, L, TB) -> (B, L, 1): tiny XLA-side layout plumbing (B*L floats).
    out = jnp.transpose(out_blk, (0, 2, 1)).reshape(g * tb, L)[:B]
    return out[..., None]


def reference(x, w, b):
    """Pure-JAX reference mirroring the PyTorch forward semantics."""
    B, L, _ = x.shape
    avg = jnp.mean(x, axis=2)                              # (B, L)
    mx = jnp.max(x, axis=2)                                # (B, L)
    avg_p = jnp.pad(avg, ((0, 0), (PAD, PAD)))
    mx_p = jnp.pad(mx, ((0, 0), (PAD, PAD)))
    out = jnp.full((B, L), b[0], dtype=jnp.float32)
    for j in range(K):
        out = out + w[0, j] * avg_p[:, j:j + L] + w[1, j] * mx_p[:, j:j + L]
    return jax.nn.sigmoid(out)[..., None]                  # (B, L, 1)


if __name__ == "__main__":
    key = jax.random.PRNGKey(0)
    kx, kw, kb = jax.random.split(key, 3)

    B, L, C = 8, 16, 64                                    # batch, seq, hidden
    x = jax.random.normal(kx, (B, L, C), dtype=jnp.float32)

    # Deterministic Conv1d(2, 1, 7) parameters (PyTorch default init bound).
    bound = 1.0 / (2 * K) ** 0.5
    w = jax.random.uniform(kw, (2, K), minval=-bound, maxval=bound,
                           dtype=jnp.float32)              # (out=1, in=2, k) squeezed
    b = jax.random.uniform(kb, (1,), minval=-bound, maxval=bound,
                           dtype=jnp.float32)

    out = spatial_attention(x, w, b, tb=4)                 # 2 grid steps of 4
    out = jax.block_until_ready(out)

    ref = reference(x, w, b)
    assert out.shape == (B, L, 1), out.shape
    assert jnp.allclose(out, ref, atol=1e-5, rtol=1e-5), \
        float(jnp.max(jnp.abs(out - ref)))
    print("KERNEL_OK")
</pallas_src>

<mosaic_0001>
module attributes {stable_mosaic.version = 11 : i64} {
  func.func @spatial_attn_kernel(%arg0: i32, %arg1: memref<4x16x64xf32, #tpu.memory_space<vmem>>, %arg2: memref<15xf32, #tpu.memory_space<smem>>, %arg3: memref<1x16x4xf32, #tpu.memory_space<vmem>>) attributes {dimension_semantics = [#tpu.dimension_semantics<parallel>], iteration_bounds = array<i64: 2>, scalar_prefetch = 0 : i64, scratch_operands = 0 : i64, tpu.core_type = #tpu.core_type<tc>, window_params = [{transform_indices = @transform_0, window_bounds = array<i64: 4, 16, 64>}, {transform_indices = @transform_1, window_bounds = array<i64: 15>}, {transform_indices = @transform_2, window_bounds = array<i64: 1, 16, 4>}]} {
    %0 = tpu.iota {dimensions = array<i32: 1>} : vector<16x4xi32>
    %cst = arith.constant 0.000000e+00 : f32
    %1 = vector.broadcast %cst : f32 to vector<16x4xf32>
    %cst_0 = arith.constant 0.000000e+00 : f32
    %2 = vector.broadcast %cst_0 : f32 to vector<16x4xf32>
    %c0 = arith.constant 0 : index
    %c0_1 = arith.constant 0 : index
    %c0_2 = arith.constant 0 : index
    %3 = vector.load %arg1[%c0, %c0_1, %c0_2] : memref<4x16x64xf32, #tpu.memory_space<vmem>>, vector<1x16x64xf32>
    %4 = vector.shape_cast %3 : vector<1x16x64xf32> to vector<16x64xf32>
    %cst_3 = arith.constant dense<0.000000e+00> : vector<16xf32>
    %5 = vector.multi_reduction <add>, %4, %cst_3 [1] : vector<16x64xf32> to vector<16xf32>
    %6 = vector.shape_cast %5 : vector<16xf32> to vector<16x1xf32>
    %cst_4 = arith.constant 6.400000e+01 : f32
    %7 = vector.broadcast %cst_4 : f32 to vector<16x1xf32>
    %8 = arith.divf %6, %7 : vector<16x1xf32>
    %cst_5 = arith.constant dense<0xFF800000> : vector<16xf32>
    %9 = vector.multi_reduction <maximumf>, %4, %cst_5 [1] : vector<16x64xf32> to vector<16xf32>
    %10 = vector.shape_cast %9 : vector<16xf32> to vector<16x1xf32>
    %c0_i32 = arith.constant 0 : i32
    %11 = vector.broadcast %c0_i32 : i32 to vector<16x4xi32>
    %12 = arith.cmpi eq, %0, %11 : vector<16x4xi32>
    %13 = vector.shape_cast %8 : vector<16x1xf32> to vector<16x1xf32>
    %14 = vector.broadcast %13 : vector<16x1xf32> to vector<16x4xf32>
    %15 = arith.select %12, %14, %1 : vector<16x4xi1>, vector<16x4xf32>
    %16 = vector.shape_cast %10 : vector<16x1xf32> to vector<16x1xf32>
    %17 = vector.broadcast %16 : vector<16x1xf32> to vector<16x4xf32>
    %18 = arith.select %12, %17, %2 : vector<16x4xi1>, vector<16x4xf32>
    %c1 = arith.constant 1 : index
    %c0_6 = arith.constant 0 : index
    %c0_7 = arith.constant 0 : index
    %19 = vector.load %arg1[%c1, %c0_6, %c0_7] : memref<4x16x64xf32, #tpu.memory_space<vmem>>, vector<1x16x64xf32>
    %20 = vector.shape_cast %19 : vector<1x16x64xf32> to vector<16x64xf32>
    %cst_8 = arith.constant dense<0.000000e+00> : vector<16xf32>
    %21 = vector.multi_reduction <add>, %20, %cst_8 [1] : vector<16x64xf32> to vector<16xf32>
    %22 = vector.shape_cast %21 : vector<16xf32> to vector<16x1xf32>
    %cst_9 = arith.constant 6.400000e+01 : f32
    %23 = vector.broadcast %cst_9 : f32 to vector<16x1xf32>
    %24 = arith.divf %22, %23 : vector<16x1xf32>
    %cst_10 = arith.constant dense<0xFF800000> : vector<16xf32>
    %25 = vector.multi_reduction <maximumf>, %20, %cst_10 [1] : vector<16x64xf32> to vector<16xf32>
    %26 = vector.shape_cast %25 : vector<16xf32> to vector<16x1xf32>
    %c1_i32 = arith.constant 1 : i32
    %27 = vector.broadcast %c1_i32 : i32 to vector<16x4xi32>
    %28 = arith.cmpi eq, %0, %27 : vector<16x4xi32>
    %29 = vector.shape_cast %24 : vector<16x1xf32> to vector<16x1xf32>
    %30 = vector.broadcast %29 : vector<16x1xf32> to vector<16x4xf32>
    %31 = arith.select %28, %30, %15 : vector<16x4xi1>, vector<16x4xf32>
    %32 = vector.shape_cast %26 : vector<16x1xf32> to vector<16x1xf32>
    %33 = vector.broadcast %32 : vector<16x1xf32> to vector<16x4xf32>
    %34 = arith.select %28, %33, %18 : vector<16x4xi1>, vector<16x4xf32>
    %c2 = arith.constant 2 : index
    %c0_11 = arith.constant 0 : index
    %c0_12 = arith.constant 0 : index
    %35 = vector.load %arg1[%c2, %c0_11, %c0_12] : memref<4x16x64xf32, #tpu.memory_space<vmem>>, vector<1x16x64xf32>
    %36 = vector.shape_cast %35 : vector<1x16x64xf32> to vector<16x64xf32>
    %cst_13 = arith.constant dense<0.000000e+00> : vector<16xf32>
    %37 = vector.multi_reduction <add>, %36, %cst_13 [1] : vector<16x64xf32> to vector<16xf32>
    %38 = vector.shape_cast %37 : vector<16xf32> to vector<16x1xf32>
    %cst_14 = arith.constant 6.400000e+01 : f32
    %39 = vector.broadcast %cst_14 : f32 to vector<16x1xf32>
    %40 = arith.divf %38, %39 : vector<16x1xf32>
    %cst_15 = arith.constant dense<0xFF800000> : vector<16xf32>
    %41 = vector.multi_reduction <maximumf>, %36, %cst_15 [1] : vector<16x64xf32> to vector<16xf32>
    %42 = vector.shape_cast %41 : vector<16xf32> to vector<16x1xf32>
    %c2_i32 = arith.constant 2 : i32
    %43 = vector.broadcast %c2_i32 : i32 to vector<16x4xi32>
    %44 = arith.cmpi eq, %0, %43 : vector<16x4xi32>
    %45 = vector.shape_cast %40 : vector<16x1xf32> to vector<16x1xf32>
    %46 = vector.broadcast %45 : vector<16x1xf32> to vector<16x4xf32>
    %47 = arith.select %44, %46, %31 : vector<16x4xi1>, vector<16x4xf32>
    %48 = vector.shape_cast %42 : vector<16x1xf32> to vector<16x1xf32>
    %49 = vector.broadcast %48 : vector<16x1xf32> to vector<16x4xf32>
    %50 = arith.select %44, %49, %34 : vector<16x4xi1>, vector<16x4xf32>
    %c3 = arith.constant 3 : index
    %c0_16 = arith.constant 0 : index
    %c0_17 = arith.constant 0 : index
    %51 = vector.load %arg1[%c3, %c0_16, %c0_17] : memref<4x16x64xf32, #tpu.memory_space<vmem>>, vector<1x16x64xf32>
    %52 = vector.shape_cast %51 : vector<1x16x64xf32> to vector<16x64xf32>
    %cst_18 = arith.constant dense<0.000000e+00> : vector<16xf32>
    %53 = vector.multi_reduction <add>, %52, %cst_18 [1] : vector<16x64xf32> to vector<16xf32>
    %54 = vector.shape_cast %53 : vector<16xf32> to vector<16x1xf32>
    %cst_19 = arith.constant 6.400000e+01 : f32
    %55 = vector.broadcast %cst_19 : f32 to vector<16x1xf32>
    %56 = arith.divf %54, %55 : vector<16x1xf32>
    %cst_20 = arith.constant dense<0xFF800000> : vector<16xf32>
    %57 = vector.multi_reduction <maximumf>, %52, %cst_20 [1] : vector<16x64xf32> to vector<16xf32>
    %58 = vector.shape_cast %57 : vector<16xf32> to vector<16x1xf32>
    %c3_i32 = arith.constant 3 : i32
    %59 = vector.broadcast %c3_i32 : i32 to vector<16x4xi32>
    %60 = arith.cmpi eq, %0, %59 : vector<16x4xi32>
    %61 = vector.shape_cast %56 : vector<16x1xf32> to vector<16x1xf32>
    %62 = vector.broadcast %61 : vector<16x1xf32> to vector<16x4xf32>
    %63 = arith.select %60, %62, %47 : vector<16x4xi1>, vector<16x4xf32>
    %64 = vector.shape_cast %58 : vector<16x1xf32> to vector<16x1xf32>
    %65 = vector.broadcast %64 : vector<16x1xf32> to vector<16x4xf32>
    %66 = arith.select %60, %65, %50 : vector<16x4xi1>, vector<16x4xf32>
    %cst_21 = arith.constant 0.000000e+00 : f32
    %67 = vector.broadcast %cst_21 : f32 to vector<3x4xf32>
    %68 = tpu.concatenate %67, %63, %67 in 0 : vector<3x4xf32>, vector<16x4xf32>, vector<3x4xf32> -> vector<22x4xf32>
    %69 = tpu.concatenate %67, %66, %67 in 0 : vector<3x4xf32>, vector<16x4xf32>, vector<3x4xf32> -> vector<22x4xf32>
    %c0_22 = arith.constant 0 : index
    %70 = memref.load %arg2[%c0_22] : memref<15xf32, #tpu.memory_space<smem>>
    %c1_23 = arith.constant 1 : index
    %71 = memref.load %arg2[%c1_23] : memref<15xf32, #tpu.memory_space<smem>>
    %c2_24 = arith.constant 2 : index
    %72 = memref.load %arg2[%c2_24] : memref<15xf32, #tpu.memory_space<smem>>
    %c3_25 = arith.constant 3 : index
    %73 = memref.load %arg2[%c3_25] : memref<15xf32, #tpu.memory_space<smem>>
    %c4 = arith.constant 4 : index
    %74 = memref.load %arg2[%c4] : memref<15xf32, #tpu.memory_space<smem>>
    %c5 = arith.constant 5 : index
    %75 = memref.load %arg2[%c5] : memref<15xf32, #tpu.memory_space<smem>>
    %c6 = arith.constant 6 : index
    %76 = memref.load %arg2[%c6] : memref<15xf32, #tpu.memory_space<smem>>
    %c7 = arith.constant 7 : index
    %77 = memref.load %arg2[%c7] : memref<15xf32, #tpu.memory_space<smem>>
    %c8 = arith.constant 8 : index
    %78 = memref.load %arg2[%c8] : memref<15xf32, #tpu.memory_space<smem>>
    %c9 = arith.constant 9 : index
    %79 = memref.load %arg2[%c9] : memref<15xf32, #tpu.memory_space<smem>>
    %c10 = arith.constant 10 : index
    %80 = memref.load %arg2[%c10] : memref<15xf32, #tpu.memory_space<smem>>
    %c11 = arith.constant 11 : index
    %81 = memref.load %arg2[%c11] : memref<15xf32, #tpu.memory_space<smem>>
    %c12 = arith.constant 12 : index
    %82 = memref.load %arg2[%c12] : memref<15xf32, #tpu.memory_space<smem>>
    %c13 = arith.constant 13 : index
    %83 = memref.load %arg2[%c13] : memref<15xf32, #tpu.memory_space<smem>>
    %c14 = arith.constant 14 : index
    %84 = memref.load %arg2[%c14] : memref<15xf32, #tpu.memory_space<smem>>
    %85 = vector.broadcast %84 : f32 to vector<16x4xf32>
    %86 = vector.extract_strided_slice %68 {offsets = [0, 0], sizes = [16, 4], strides = [1, 1]} : vector<22x4xf32> to vector<16x4xf32>
    %87 = vector.broadcast %70 : f32 to vector<16x4xf32>
    %88 = arith.mulf %87, %86 : vector<16x4xf32>
    %89 = arith.addf %85, %88 : vector<16x4xf32>
    %90 = vector.extract_strided_slice %69 {offsets = [0, 0], sizes = [16, 4], strides = [1, 1]} : vector<22x4xf32> to vector<16x4xf32>
    %91 = vector.broadcast %77 : f32 to vector<16x4xf32>
    %92 = arith.mulf %91, %90 : vector<16x4xf32>
    %93 = arith.addf %89, %92 : vector<16x4xf32>
    %94 = vector.extract_strided_slice %68 {offsets = [1, 0], sizes = [16, 4], strides = [1, 1]} : vector<22x4xf32> to vector<16x4xf32>
    %95 = vector.broadcast %71 : f32 to vector<16x4xf32>
    %96 = arith.mulf %95, %94 : vector<16x4xf32>
    %97 = arith.addf %93, %96 : vector<16x4xf32>
    %98 = vector.extract_strided_slice %69 {offsets = [1, 0], sizes = [16, 4], strides = [1, 1]} : vector<22x4xf32> to vector<16x4xf32>
    %99 = vector.broadcast %78 : f32 to vector<16x4xf32>
    %100 = arith.mulf %99, %98 : vector<16x4xf32>
    %101 = arith.addf %97, %100 : vector<16x4xf32>
    %102 = vector.extract_strided_slice %68 {offsets = [2, 0], sizes = [16, 4], strides = [1, 1]} : vector<22x4xf32> to vector<16x4xf32>
    %103 = vector.broadcast %72 : f32 to vector<16x4xf32>
    %104 = arith.mulf %103, %102 : vector<16x4xf32>
    %105 = arith.addf %101, %104 : vector<16x4xf32>
    %106 = vector.extract_strided_slice %69 {offsets = [2, 0], sizes = [16, 4], strides = [1, 1]} : vector<22x4xf32> to vector<16x4xf32>
    %107 = vector.broadcast %79 : f32 to vector<16x4xf32>
    %108 = arith.mulf %107, %106 : vector<16x4xf32>
    %109 = arith.addf %105, %108 : vector<16x4xf32>
    %110 = vector.extract_strided_slice %68 {offsets = [3, 0], sizes = [16, 4], strides = [1, 1]} : vector<22x4xf32> to vector<16x4xf32>
    %111 = vector.broadcast %73 : f32 to vector<16x4xf32>
    %112 = arith.mulf %111, %110 : vector<16x4xf32>
    %113 = arith.addf %109, %112 : vector<16x4xf32>
    %114 = vector.extract_strided_slice %69 {offsets = [3, 0], sizes = [16, 4], strides = [1, 1]} : vector<22x4xf32> to vector<16x4xf32>
    %115 = vector.broadcast %80 : f32 to vector<16x4xf32>
    %116 = arith.mulf %115, %114 : vector<16x4xf32>
    %117 = arith.addf %113, %116 : vector<16x4xf32>
    %118 = vector.extract_strided_slice %68 {offsets = [4, 0], sizes = [16, 4], strides = [1, 1]} : vector<22x4xf32> to vector<16x4xf32>
    %119 = vector.broadcast %74 : f32 to vector<16x4xf32>
    %120 = arith.mulf %119, %118 : vector<16x4xf32>
    %121 = arith.addf %117, %120 : vector<16x4xf32>
    %122 = vector.extract_strided_slice %69 {offsets = [4, 0], sizes = [16, 4], strides = [1, 1]} : vector<22x4xf32> to vector<16x4xf32>
    %123 = vector.broadcast %81 : f32 to vector<16x4xf32>
    %124 = arith.mulf %123, %122 : vector<16x4xf32>
    %125 = arith.addf %121, %124 : vector<16x4xf32>
    %126 = vector.extract_strided_slice %68 {offsets = [5, 0], sizes = [16, 4], strides = [1, 1]} : vector<22x4xf32> to vector<16x4xf32>
    %127 = vector.broadcast %75 : f32 to vector<16x4xf32>
    %128 = arith.mulf %127, %126 : vector<16x4xf32>
    %129 = arith.addf %125, %128 : vector<16x4xf32>
    %130 = vector.extract_strided_slice %69 {offsets = [5, 0], sizes = [16, 4], strides = [1, 1]} : vector<22x4xf32> to vector<16x4xf32>
    %131 = vector.broadcast %82 : f32 to vector<16x4xf32>
    %132 = arith.mulf %131, %130 : vector<16x4xf32>
    %133 = arith.addf %129, %132 : vector<16x4xf32>
    %134 = vector.extract_strided_slice %68 {offsets = [6, 0], sizes = [16, 4], strides = [1, 1]} : vector<22x4xf32> to vector<16x4xf32>
    %135 = vector.broadcast %76 : f32 to vector<16x4xf32>
    %136 = arith.mulf %135, %134 : vector<16x4xf32>
    %137 = arith.addf %133, %136 : vector<16x4xf32>
    %138 = vector.extract_strided_slice %69 {offsets = [6, 0], sizes = [16, 4], strides = [1, 1]} : vector<22x4xf32> to vector<16x4xf32>
    %139 = vector.broadcast %83 : f32 to vector<16x4xf32>
    %140 = arith.mulf %139, %138 : vector<16x4xf32>
    %141 = arith.addf %137, %140 : vector<16x4xf32>
    %142 = arith.negf %141 : vector<16x4xf32>
    %143 = math.exp %142 : vector<16x4xf32>
    %cst_26 = arith.constant 1.000000e+00 : f32
    %144 = vector.broadcast %cst_26 : f32 to vector<16x4xf32>
    %145 = arith.addf %144, %143 : vector<16x4xf32>
    %146 = arith.divf %144, %145 : vector<16x4xf32>
    %c0_27 = arith.constant 0 : index
    %c0_28 = arith.constant 0 : index
    %c0_29 = arith.constant 0 : index
    %147 = vector.load %arg3[%c0_27, %c0_28, %c0_29] : memref<1x16x4xf32, #tpu.memory_space<vmem>>, vector<1x16x4xf32>
    %148 = vector.shape_cast %147 : vector<1x16x4xf32> to vector<16x4xf32>
    %149 = vector.shape_cast %146 : vector<16x4xf32> to vector<1x16x4xf32>
    tpu.vector_store %arg3[%c0_27, %c0_28, %c0_29], %149 {strides = array<i32>} : memref<1x16x4xf32, #tpu.memory_space<vmem>>, vector<1x16x4xf32>,
    return
  }
  func.func @transform_0(%arg0: i32) -> (i32, i32, i32) {
    %c0_i32 = arith.constant 0 : i32
    %c0_i32_0 = arith.constant 0 : i32
    %c0_i32_1 = arith.constant 0 : i32
    return %arg0, %c0_i32, %c0_i32_0 : i32, i32, i32
  }
  func.func @transform_1(%arg0: i32) -> i32 {
    %c0_i32 = arith.constant 0 : i32
    %c0_i32_0 = arith.constant 0 : i32
    return %c0_i32 : i32
  }
  func.func @transform_2(%arg0: i32) -> (i32, i32, i32) {
    %c0_i32 = arith.constant 0 : i32
    %c0_i32_0 = arith.constant 0 : i32
    %c0_i32_1 = arith.constant 0 : i32
    return %arg0, %c0_i32, %c0_i32_0 : i32, i32, i32
  }
}

</mosaic_0001>

<llo_original>
// kernel: tpu_custom_call.1
$region0: #{tpu_custom_call.1}
  #allocation0 [shape = 'u32[]', space=smem, size = 0x4, offset = 0x4, fixed_abs, tag = 'smem constant byte address 0x4 - core index']
  #allocation1 [shape = 'u32[144,128]{1,0:T(1,128)}', space=vmem, size = 0x12000, scoped, tag = 'internal scratch']
  %s0 = inlined_call_operand.hbm [shape: f32[8,16,64], index: 0, kind: input, shape index: {}]
  %s1 = inlined_call_operand.vmem [shape: f32[15], index: 1, kind: input, shape index: {}]
  %s2 = inlined_call_operand.vmem [shape: f32[2,16,4], index: 2, kind: output, shape index: {}]
  %s3 = sld [smem:[#allocation0]]
  $region49: #{tpu_custom_call.1} parent=0
    _
  %s5 = ssub.s32 1, %s3
  %s6 = scalar_select 0, %s5, %s3
  $region1: #{tpu_custom_call.1} parent=0
    #allocation2 [shape = 'u8[65536]{0}', space=vmem, size = 0x10000, scoped, tag = 'input window, operand 0']
    #allocation3 [shape = 's32[2]{0}', space=sflag, size = 0x8, scoped, tag = 'scoped memory for tpu_custom_call.1']
    #allocation4 [shape = 's32[2]{0}', space=sflag, size = 0x8, scoped, tag = 'scoped memory for tpu_custom_call.1']
    #allocation5 [shape = 'u8[512]{0}', space=smem, size = 0x200, scoped, tag = 'input window, operand 1, single buffered']
    %7 = vsyncpa [#allocation3], 0
    %s8 = scalar_lea.sflag [#allocation3], 1
    %9 = vsyncpa %s8, 0
    %10 = vsyncpa [#allocation4], 0
    loop: start=0, step=1, limit=4
    $region2: #{tpu_custom_call.1} parent=1 // loop_pre_header
      _
    $region3: #{tpu_custom_call.1} parent=1 // loop_header
      %s12 = sphi 0, %s16
      %p13 = scmp.ge.s32.totalorder %s12, 4
      %s22 = sphi 0, %s24
      %s25 = sphi 0, %s22
      %s26 = sphi 0, %s25
      %s42 = sphi 0, %s26
      %s46 = sphi 0, %s46
      %s48 = sphi 0, %s46
      %s49 = sphi 0, %s48
      %s63 = sphi 0, %s49
      %s69 = sphi 0, %s71
      %s72 = sphi 0, %s69
      %s73 = sphi 0, %s72
      %s89 = sphi 0, %s73
    $region4: #{tpu_custom_call.1} parent=1 // loop_header_branch
      %15 = sbr.rel (%p13) target = $region8
    $region5: #{tpu_custom_call.1} parent=1 // loop_body
      %s17 = ssub.s32 %s12, 1
      %s18 = ssub.s32 %s12, 2
      %s19 = sadd.s32 %s12, 1
      %s20 = ssub.s32 %s12, %s19
      %p21 = scmp.eq.s32.totalorder %s20, 0
      %s23 = sadd.s32 %s22, 1
      %s24 = scalar_select %p21, %s22, %s23
      %p27 = pneg %p21
      %p28 = scmp.eq.s32.totalorder %s12, 1
      %p29 = por %p27, %p28
      %p30 = scmp.ne.s32.totalorder %s22, %s25
      %p31 = scmp.eq.s32.totalorder %s12, 0
      %p32 = por %p30, %p31
      %p33 = scmp.ne.s32.totalorder %s22, %s25
      %p34 = scmp.eq.s32.totalorder %s17, 1
      %p35 = por %p33, %p34
      %p36 = scmp.ne.s32.totalorder %s25, %s26
      %p37 = scmp.eq.s32.totalorder %s17, 0
      %p38 = por %p36, %p37
      %p39 = scmp.ne.s32.totalorder %s25, %s26
      %p40 = scmp.eq.s32.totalorder %s18, 1
      %p41 = por %p39, %p40
      %p43 = scmp.ne.s32.totalorder %s26, %s42
      %p44 = scmp.eq.s32.totalorder %s18, 0
      %p45 = por %p43, %p44
      %s47 = sadd.s32 %s46, 1
      %p50 = scmp.eq.s32.totalorder %s12, 1
      %p51 = scmp.ne.s32.totalorder %s46, %s48
      %p52 = scmp.eq.s32.totalorder %s12, 0
      %p53 = por %p51, %p52
      %p54 = scmp.ne.s32.totalorder %s46, %s48
      %p55 = scmp.eq.s32.totalorder %s17, 1
      %p56 = por %p54, %p55
      %p57 = scmp.ne.s32.totalorder %s48, %s49
      %p58 = scmp.eq.s32.totalorder %s17, 0
      %p59 = por %p57, %p58
      %p60 = scmp.ne.s32.totalorder %s48, %s49
      %p61 = scmp.eq.s32.totalorder %s18, 1
      %p62 = por %p60, %p61
      %p64 = scmp.ne.s32.totalorder %s49, %s63
      %p65 = scmp.eq.s32.totalorder %s18, 0
      %p66 = por %p64, %p65
      %s67 = ssub.s32 %s12, %s19
      %p68 = scmp.eq.s32.totalorder %s67, 0
      %s70 = sadd.s32 %s69, 1
      %s71 = scalar_select %p68, %s69, %s70
      %p74 = pneg %p68
      %p75 = scmp.eq.s32.totalorder %s12, 1
      %p76 = por %p74, %p75
      %p77 = scmp.ne.s32.totalorder %s69, %s72
      %p78 = scmp.eq.s32.totalorder %s12, 0
      %p79 = por %p77, %p78
      %p80 = scmp.ne.s32.totalorder %s69, %s72
      %p81 = scmp.eq.s32.totalorder %s17, 1
      %p82 = por %p80, %p81
      %p83 = scmp.ne.s32.totalorder %s72, %s73
      %p84 = scmp.eq.s32.totalorder %s17, 0
      %p85 = por %p83, %p84
      %p86 = scmp.ne.s32.totalorder %s72, %s73
      %p87 = scmp.eq.s32.totalorder %s18, 1
      %p88 = por %p86, %p87
      %p90 = scmp.ne.s32.totalorder %s73, %s89
      %p91 = scmp.eq.s32.totalorder %s18, 0
      %p92 = por %p90, %p91
      %p93 = scmp.le.s32.totalorder 1, %s12
      %p94 = scmp.lt.s32.totalorder %s12, 3
      %p95 = pnand %p93, %p94
      %p96 = pneg %p95
      // Predicated region
      $region9: #{tpu_custom_call.1} parent=5 // pred_check
        _
      $region10: #{tpu_custom_call.1} parent=5 // pred_check_branch
        %98 = sbr.rel (%p95) target = $region12
      $region11: #{tpu_custom_call.1} parent=5 // pred_region
        %s99 = ssub.s32 %s12, 1
        // Predicated region
        $region13: #{tpu_custom_call.1} parent=11 // pred_check
          %p100 = pneg %p59
        $region14: #{tpu_custom_call.1} parent=11 // pred_check_branch
          %102 = sbr.rel (%p100) target = $region16
        $region15: #{tpu_custom_call.1} parent=11 // pred_region
          %s104 = ssub.s32 16, 16
          %105 = vsyncadd [#allocation4], %s104
          %s107 = sshll.u32 %s1, 4
          %s108 = int_to_ptr.vmem [resolvable:$true] %s107
          %110 = dma.vmem_to_smem %s108, 16, [#allocation5], [#allocation4]
        $region16: #{tpu_custom_call.1} parent=11 // pred_fallthru
          _
      $region12: #{tpu_custom_call.1} parent=5 // pred_fallthru
        _
      %p111 = scmp.lt.s32.totalorder %s12, 2
      // Predicated region
      $region17: #{tpu_custom_call.1} parent=5 // pred_check
        %p112 = pneg %p111
      $region18: #{tpu_custom_call.1} parent=5 // pred_check_branch
        %114 = sbr.rel (%p112) target = $region20
      $region19: #{tpu_custom_call.1} parent=5 // pred_region
        // Predicated region
        $region21: #{tpu_custom_call.1} parent=19 // pred_check
          %p115 = pneg %p32
        $region22: #{tpu_custom_call.1} parent=19 // pred_check_branch
          %117 = sbr.rel (%p115) target = $region24
        $region23: #{tpu_custom_call.1} parent=19 // pred_region
          %s118 = sand.u32 %s22, 1
          %s119 = scalar_lea.sflag [#allocation3], %s118
          %s120 = sand.u32 %s22, 1
          %s121 = smul.addr %s120, 64
          %s122 = scalar_lea.vmem [#allocation2], %s121
          %s123 = smul.u32 4, %s12
          %s125 = ssub.s32 1024, 1024
          %126 = vsyncadd %s119, %s125
          %s127 = smul.addr %s123, 2
          %s128 = smul.addr %s127, 128
          %s129 = scalar_lea.hbm %s0, %s128
          %s130 = sshll.u32 %s122, 4
          %s131 = int_to_ptr.vmem [resolvable:$true] %s130
          %136 = dma.hbm_to_vmem [thread:$0]  %s129, 1024, %s131, %s119, 128, 128, 8
        $region24: #{tpu_custom_call.1} parent=19 // pred_fallthru
          _
      $region20: #{tpu_custom_call.1} parent=5 // pred_fallthru
        _
      %p137 = scmp.le.s32.totalorder 1, %s12
      %p138 = scmp.lt.s32.totalorder %s12, 3
      %p139 = pnand %p137, %p138
      %p140 = pneg %p139
      // Predicated region
      $region25: #{tpu_custom_call.1} parent=5 // pred_check
        _
      $region26: #{tpu_custom_call.1} parent=5 // pred_check_branch
        %142 = sbr.rel (%p139) target = $region28
      $region27: #{tpu_custom_call.1} parent=5 // pred_region
        %s143 = ssub.s32 %s12, 1
        %s144 = sand.u32 %s25, 1
        %s145 = scalar_lea.sflag [#allocation3], %s144
        %s146 = sand.u32 %s25, 1
        %s147 = smul.addr %s146, 64
        %s148 = scalar_lea.vmem [#allocation2], %s147
        // Predicated region
        $region29: #{tpu_custom_call.1} parent=27 // pred_check
          %p149 = pneg %p38
        $region30: #{tpu_custom_call.1} parent=27 // pred_check_branch
          %151 = sbr.rel (%p149) target = $region32
        $region31: #{tpu_custom_call.1} parent=27 // pred_region
          %152 = dma.done %s145, 1024
        $region32: #{tpu_custom_call.1} parent=27 // pred_fallthru
          _
        // Predicated region
        $region33: #{tpu_custom_call.1} parent=27 // pred_check
          %p153 = pneg %p59
        $region34: #{tpu_custom_call.1} parent=27 // pred_check_branch
          %155 = sbr.rel (%p153) target = $region36
        $region35: #{tpu_custom_call.1} parent=27 // pred_region
          %156 = dma.done [#allocation4], 16
        $region36: #{tpu_custom_call.1} parent=27 // pred_fallthru
          _
        %157 = sfence
        %s158 = sand.u32 %s25, 1
        %s159 = scalar_lea.sflag [#allocation3], %s158
        %s160 = sand.u32 %s25, 1
        %s161 = smul.addr %s160, 64
        %s162 = scalar_lea.vmem [#allocation2], %s161
        %p163 = pneg %p38
        %p164 = pneg %p35
        %p165 = pneg %p59
        %p166 = pneg %p56
        %p167 = pneg %p85
        %p168 = pneg %p82
        %p169 = scmp.lt.s32.totalorder %s17, 1
        %s170 = scalar_select %p169, %s17, 1
        %s171 = smul.addr %s170, 2
        %s172 = smul.addr %s171, 8
        %s173 = scalar_lea.vmem %s2, %s172
        %s174 = smul.u32 4, %s17
        %p175 = scmp.lt.s32.totalorder %s17, 1
        %s176 = scalar_select %p175, %s17, 1
        %s177 = smul.addr %s176, 2
        %s178 = smul.addr %s177, 8
        %s179 = scalar_lea.vmem %s2, %s178
        %v180 = vlaneseq
        %v181 = vand.u32 %v180, 127
        %v182 = vld [vmem:[%s148] sm:$0xff]
        %v183 = vld [vmem:[%s148 + $0x8] sm:$0xff]
        %vm184 = vcmask 523264
        %v185 = vsel %vm184, %v182, 0.0
        %186 = vadd.xlane.f32.xlu0 %v185
        %v187 = vpop.xlane.xlu0 %186
        %v188 = vsel %vm184, %v183, 0.0
        %189 = vadd.xlane.f32.xlu0 %v188
        %v190 = vpop.xlane.xlu0 %189
        %v191 = vrcp.pop 64.0
        %v192 = vmul.f32 %v187, %v191
        %v193 = vmul.f32 %v190, %v191
        %v194 = vsel %vm184, %v182, -inf
        %195 = vmax.xlane.f32.xlu0 %v194
        %v196 = vpop.xlane.xlu0 %195
        %v197 = vsel %vm184, %v183, -inf
        %198 = vmax.xlane.f32.xlu0 %v197
        %v199 = vpop.xlane.xlu0 %198
        %vm200 = vcmp.eq.s32.totalorder %v181, 0
        %v201 = vsel %vm200, %v192, 0.0
        %v202 = vsel %vm200, %v193, 0.0
        %v203 = vsel %vm200, %v196, 0.0
        %v204 = vsel %vm200, %v199, 0.0
        %s205 = scalar_lea.vmem %s148, 16 [#allocation2]
        %v206 = vld [vmem:[%s205] sm:$0xff]
        %v207 = vld [vmem:[%s205 + $0x8] sm:$0xff]
        %v208 = vsel %vm184, %v206, 0.0
        %209 = vadd.xlane.f32.xlu0 %v208
        %v210 = vpop.xlane.xlu0 %209
        %v211 = vsel %vm184, %v207, 0.0
        %212 = vadd.xlane.f32.xlu0 %v211
        %v213 = vpop.xlane.xlu0 %212
        %v214 = vmul.f32 %v210, %v191
        %v215 = vmul.f32 %v213, %v191
        %v216 = vsel %vm184, %v206, -inf
        %217 = vmax.xlane.f32.xlu0 %v216
        %v218 = vpop.xlane.xlu0 %217
        %v219 = vsel %vm184, %v207, -inf
        %220 = vmax.xlane.f32.xlu0 %v219
        %v221 = vpop.xlane.xlu0 %220
        %vm222 = vcmp.eq.s32.totalorder %v181, 1
        %v223 = vsel %vm222, %v214, %v201
        %v224 = vsel %vm222, %v215, %v202
        %v225 = vsel %vm222, %v218, %v203
        %v226 = vsel %vm222, %v221, %v204
        %s227 = scalar_lea.vmem %s148, 32 [#allocation2]
        %v228 = vld [vmem:[%s227] sm:$0xff]
        %v229 = vld [vmem:[%s227 + $0x8] sm:$0xff]
        %v230 = vsel %vm184, %v228, 0.0
        %231 = vadd.xlane.f32.xlu0 %v230
        %v232 = vpop.xlane.xlu0 %231
        %v233 = vsel %vm184, %v229, 0.0
        %234 = vadd.xlane.f32.xlu0 %v233
        %v235 = vpop.xlane.xlu0 %234
        %v236 = vmul.f32 %v232, %v191
        %v237 = vmul.f32 %v235, %v191
        %v238 = vsel %vm184, %v228, -inf
        %239 = vmax.xlane.f32.xlu0 %v238
        %v240 = vpop.xlane.xlu0 %239
        %v241 = vsel %vm184, %v229, -inf
        %242 = vmax.xlane.f32.xlu0 %v241
        %v243 = vpop.xlane.xlu0 %242
        %vm244 = vcmp.eq.s32.totalorder %v181, 2
        %v245 = vsel %vm244, %v236, %v223
        %v246 = vsel %vm244, %v237, %v224
        %v247 = vsel %vm244, %v240, %v225
        %v248 = vsel %vm244, %v243, %v226
        %s249 = scalar_lea.vmem %s148, 48 [#allocation2]
        %v250 = vld [vmem:[%s249] sm:$0xff]
        %v251 = vld [vmem:[%s249 + $0x8] sm:$0xff]
        %v252 = vsel %vm184, %v250, 0.0
        %253 = vadd.xlane.f32.xlu0 %v252
        %v254 = vpop.xlane.xlu0 %253
        %v255 = vsel %vm184, %v251, 0.0
        %256 = vadd.xlane.f32.xlu0 %v255
        %v257 = vpop.xlane.xlu0 %256
        %v258 = vmul.f32 %v254, %v191
        %v259 = vmul.f32 %v257, %v191
        %v260 = vsel %vm184, %v250, -inf
        %261 = vmax.xlane.f32.xlu0 %v260
        %v262 = vpop.xlane.xlu0 %261
        %v263 = vsel %vm184, %v251, -inf
        %264 = vmax.xlane.f32.xlu0 %v263
        %v265 = vpop.xlane.xlu0 %264
        %vm266 = vcmp.eq.s32.totalorder %v181, 3
        %v267 = vsel %vm266, %v258, %v245
        %v268 = vsel %vm266, %v259, %v246
        %v269 = vsel %vm266, %v262, %v247
        %v270 = vsel %vm266, %v265, %v248
        %vm273 = vcmask 1042432
        %v274 = vrot.slane %v267, 5
        %v275 = vrot.slane %v268, 5
        %v276 = vsel %vm273, %v274, %v275
        %v280 = vsel %vm273, 0.0, %v274
        %v281 = vsel %vm273, %v275, 0.0
        %v284 = vrot.slane %v269, 5
        %v285 = vrot.slane %v270, 5
        %v286 = vsel %vm273, %v284, %v285
        %v290 = vsel %vm273, 0.0, %v284
        %v291 = vsel %vm273, %v285, 0.0
        %s292 = sld [smem:[#allocation5]]
        %s293 = sld [smem:[#allocation5 + $0x1]]
        %s294 = sld [smem:[#allocation5 + $0x2]]
        %s295 = sld [smem:[#allocation5 + $0x3]]
        %s296 = sld [smem:[#allocation5 + $0x4]]
        %s297 = sld [smem:[#allocation5 + $0x5]]
        %s298 = sld [smem:[#allocation5 + $0x6]]
        %s299 = sld [smem:[#allocation5 + $0x7]]
        %s300 = sld [smem:[#allocation5 + $0x8]]
        %s301 = sld [smem:[#allocation5 + $0x9]]
        %s302 = sld [smem:[#allocation5 + $0xa]]
        %s303 = sld [smem:[#allocation5 + $0xb]]
        %s304 = sld [smem:[#allocation5 + $0xc]]
        %s305 = sld [smem:[#allocation5 + $0xd]]
        %s306 = sld [smem:[#allocation5 + $0xe]]
        %v307 = vstv %s306
        %v308 = vstv %s292
        %v309 = vmul.f32 %v308, %v280
        %v310 = vmul.f32 %v308, %v276
        %v311 = vadd.f32 %v307, %v309
        %v312 = vadd.f32 %v307, %v310
        %v313 = vstv %s299
        %v314 = vmul.f32 %v313, %v290
        %v315 = vmul.f32 %v313, %v286
        %v316 = vadd.f32 %v311, %v314
        %v317 = vadd.f32 %v312, %v315
        %v318 = vstv %s293
        %v319 = vmul.f32 %v318, %v280
        %v320 = vmul.f32 %v318, %v276
        %v321 = vmul.f32 %v318, %v281
        %vm325 = vcmask 1046528
        %v326 = vrot.slane %v319, 1
        %v327 = vrot.slane %v320, 1
        %v328 = vsel %vm325, %v326, %v327
        %v329 = vrot.slane %v321, 1
        %v330 = vsel %vm325, %v327, %v329
        %v333 = vadd.f32 %v316, %v328
        %v334 = vadd.f32 %v317, %v330
        %v335 = vstv %s300
        %v336 = vmul.f32 %v335, %v290
        %v337 = vmul.f32 %v335, %v286
        %v338 = vmul.f32 %v335, %v291
        %v342 = vrot.slane %v336, 1
        %v343 = vrot.slane %v337, 1
        %v344 = vsel %vm325, %v342, %v343
        %v345 = vrot.slane %v338, 1
        %v346 = vsel %vm325, %v343, %v345
        %v349 = vadd.f32 %v333, %v344
        %v350 = vadd.f32 %v334, %v346
        %v351 = vstv %s294
        %v352 = vmul.f32 %v351, %v280
        %v353 = vmul.f32 %v351, %v276
        %v354 = vmul.f32 %v351, %v281
        %vm358 = vcmask 1045504
        %v359 = vrot.slane %v352, 2
        %v360 = vrot.slane %v353, 2
        %v361 = vsel %vm358, %v359, %v360
        %v362 = vrot.slane %v354, 2
        %v363 = vsel %vm358, %v360, %v362
        %v366 = vadd.f32 %v349, %v361
        %v367 = vadd.f32 %v350, %v363
        %v368 = vstv %s301
        %v369 = vmul.f32 %v368, %v290
        %v370 = vmul.f32 %v368, %v286
        %v371 = vmul.f32 %v368, %v291
        %v375 = vrot.slane %v369, 2
        %v376 = vrot.slane %v370, 2
        %v377 = vsel %vm358, %v375, %v376
        %v378 = vrot.slane %v371, 2
        %v379 = vsel %vm358, %v376, %v378
        %v382 = vadd.f32 %v366, %v377
        %v383 = vadd.f32 %v367, %v379
        %v384 = vstv %s295
        %v385 = vmul.f32 %v384, %v280
        %v386 = vmul.f32 %v384, %v276
        %v387 = vmul.f32 %v384, %v281
        %vm391 = vcmask 1044480
        %v392 = vrot.slane %v385, 3
        %v393 = vrot.slane %v386, 3
        %v394 = vsel %vm391, %v392, %v393
        %v395 = vrot.slane %v387, 3
        %v396 = vsel %vm391, %v393, %v395
        %v399 = vadd.f32 %v382, %v394
        %v400 = vadd.f32 %v383, %v396
        %v401 = vstv %s302
        %v402 = vmul.f32 %v401, %v290
        %v403 = vmul.f32 %v401, %v286
        %v404 = vmul.f32 %v401, %v291
        %v408 = vrot.slane %v402, 3
        %v409 = vrot.slane %v403, 3
        %v410 = vsel %vm391, %v408, %v409
        %v411 = vrot.slane %v404, 3
        %v412 = vsel %vm391, %v409, %v411
        %v415 = vadd.f32 %v399, %v410
        %v416 = vadd.f32 %v400, %v412
        %v417 = vstv %s296
        %v418 = vmul.f32 %v417, %v280
        %v419 = vmul.f32 %v417, %v276
        %v420 = vmul.f32 %v417, %v281
        %vm424 = vcmask 1043456
        %v425 = vrot.slane %v418, 4
        %v426 = vrot.slane %v419, 4
        %v427 = vsel %vm424, %v425, %v426
        %v428 = vrot.slane %v420, 4
        %v429 = vsel %vm424, %v426, %v428
        %v432 = vadd.f32 %v415, %v427
        %v433 = vadd.f32 %v416, %v429
        %v434 = vstv %s303
        %v435 = vmul.f32 %v434, %v290
        %v436 = vmul.f32 %v434, %v286
        %v437 = vmul.f32 %v434, %v291
        %v441 = vrot.slane %v435, 4
        %v442 = vrot.slane %v436, 4
        %v443 = vsel %vm424, %v441, %v442
        %v444 = vrot.slane %v437, 4
        %v445 = vsel %vm424, %v442, %v444
        %v448 = vadd.f32 %v432, %v443
        %v449 = vadd.f32 %v433, %v445
        %v450 = vstv %s297
        %v451 = vmul.f32 %v450, %v280
        %v452 = vmul.f32 %v450, %v276
        %v453 = vmul.f32 %v450, %v281
        %v457 = vrot.slane %v451, 5
        %v458 = vrot.slane %v452, 5
        %v459 = vsel %vm273, %v457, %v458
        %v460 = vrot.slane %v453, 5
        %v461 = vsel %vm273, %v458, %v460
        %v464 = vadd.f32 %v448, %v459
        %v465 = vadd.f32 %v449, %v461
        %v466 = vstv %s304
        %v467 = vmul.f32 %v466, %v290
        %v468 = vmul.f32 %v466, %v286
        %v469 = vmul.f32 %v466, %v291
        %v473 = vrot.slane %v467, 5
        %v474 = vrot.slane %v468, 5
        %v475 = vsel %vm273, %v473, %v474
        %v476 = vrot.slane %v469, 5
        %v477 = vsel %vm273, %v474, %v476
        %v480 = vadd.f32 %v464, %v475
        %v481 = vadd.f32 %v465, %v477
        %v482 = vstv %s298
        %v483 = vmul.f32 %v482, %v280
        %v484 = vmul.f32 %v482, %v276
        %v485 = vmul.f32 %v482, %v281
        %vm489 = vcmask 1041408
        %v490 = vrot.slane %v483, 6
        %v491 = vrot.slane %v484, 6
        %v492 = vsel %vm489, %v490, %v491
        %v493 = vrot.slane %v485, 6
        %v494 = vsel %vm489, %v491, %v493
        %v497 = vadd.f32 %v480, %v492
        %v498 = vadd.f32 %v481, %v494
        %v499 = vstv %s305
        %v500 = vmul.f32 %v499, %v290
        %v501 = vmul.f32 %v499, %v286
        %v502 = vmul.f32 %v499, %v291
        %v506 = vrot.slane %v500, 6
        %v507 = vrot.slane %v501, 6
        %v508 = vsel %vm489, %v506, %v507
        %v509 = vrot.slane %v502, 6
        %v510 = vsel %vm489, %v507, %v509
        %v513 = vadd.f32 %v497, %v508
        %v514 = vadd.f32 %v498, %v510
        %v515 = vxor.u32 %v513, 2147483648
        %v516 = vxor.u32 %v514, 2147483648
        %v517 = vmul.f32 %v515, 1.442695
        %v518 = vpow.pop %v517
        %v519 = vmul.f32 %v516, 1.442695
        %v520 = vpow.pop %v519
        %v521 = vadd.f32 %v518, 1.0
        %v522 = vadd.f32 %v520, 1.0
        %v523 = vrcp.pop %v521
        %v524 = vmul.f32 1.0, %v523
        %v525 = vrcp.pop %v522
        %v526 = vmul.f32 1.0, %v525
        %vm527 = vcmask 31744
        %528 = vst.msk [vmem:[%s179] sm:$0xff] %vm527, %v524
        %529 = vst.msk [vmem:[%s179 + $0x8] sm:$0xff] %vm527, %v526
        %p530 = scmp.lt.s32.totalorder %s17, 1
        %s531 = scalar_select %p530, %s17, 1
        %s532 = smul.addr %s531, 2
        %s533 = smul.addr %s532, 8
        %s534 = scalar_lea.vmem %s2, %s533
        // Predicated region
        $region37: #{tpu_custom_call.1} parent=27 // pred_check
          %p535 = pneg %p82
        $region38: #{tpu_custom_call.1} parent=27 // pred_check_branch
          %537 = sbr.rel (%p535) target = $region40
        $region39: #{tpu_custom_call.1} parent=27 // pred_region
          _
        $region40: #{tpu_custom_call.1} parent=27 // pred_fallthru
          _
      $region28: #{tpu_custom_call.1} parent=5 // pred_fallthru
        _
      %p538 = scmp.le.s32.totalorder 2, %s12
      // Predicated region
      $region41: #{tpu_custom_call.1} parent=5 // pred_check
        %p539 = pneg %p538
      $region42: #{tpu_custom_call.1} parent=5 // pred_check_branch
        %541 = sbr.rel (%p539) target = $region44
      $region43: #{tpu_custom_call.1} parent=5 // pred_region
        %s542 = ssub.s32 %s12, 2
        // Predicated region
        $region45: #{tpu_custom_call.1} parent=43 // pred_check
          %p543 = pneg %p88
        $region46: #{tpu_custom_call.1} parent=43 // pred_check_branch
          %545 = sbr.rel (%p543) target = $region48
        $region47: #{tpu_custom_call.1} parent=43 // pred_region
          %p546 = scmp.lt.s32.totalorder %s18, 1
          %s547 = scalar_select %p546, %s18, 1
          %s548 = smul.addr %s547, 2
          %s549 = smul.addr %s548, 8
          %s550 = scalar_lea.vmem %s2, %s549
        $region48: #{tpu_custom_call.1} parent=43 // pred_fallthru
          _
      $region44: #{tpu_custom_call.1} parent=5 // pred_fallthru
        _
    $region6: #{tpu_custom_call.1} parent=1 // loop_footer
      %s16 = sadd.s32 1, %s12
    $region7: #{tpu_custom_call.1} parent=1 // loop_footer_branch
      %11 = sbr.rel target = $region3
    $region8: #{tpu_custom_call.1} parent=1 // loop_exit
      _
    %551 = vsyncpa [#allocation3], 1
    %s552 = scalar_lea.sflag [#allocation3], 1
    %553 = vsyncpa %s552, 1
    %554 = vsyncpa [#allocation4], 1
    %s555 = scalar_lea.sflag [#allocation4], 1
    %556 = vsyncpa %s555, 1

</llo_original>
